<compile_context>
chip_gen: v5e
topology: v5e:2x2
jax: 0.10.0
libtpu: 0.0.40
codegen_flags: <defaults>
</compile_context>

<pallas_src>
import jax
import jax.numpy as jnp
from jax.experimental import pallas as pl
from jax.experimental.pallas import tpu as pltpu


def _scale_kernel(w_ref, x_ref, o_ref):
    # w_ref: (tr, 1) VMEM (compute dtype), x_ref: (tr, tc) VMEM (input dtype),
    # o_ref: (tr, tc) VMEM (promoted dtype).  Lane broadcast of the per-row
    # scale is free on the VPU; the multiply promotes to the wider dtype.
    o_ref[...] = (x_ref[...] * w_ref[...]).astype(o_ref.dtype)


def _pick_tile(dim: int, base: int, cap: int) -> int:
    """Block extent for one axis.

    If the whole axis fits under `cap`, use the full extent (always a legal
    block shape, regardless of alignment).  Otherwise use `cap` rounded down
    to a multiple of `base`; the trailing partial block is handled by a
    pl.cdiv grid (Pallas masks it).
    """
    if dim <= cap:
        return dim
    t = (cap // base) * base
    return max(t, base)


def channel_scale(x: jax.Array, weight: jax.Array,
                  *, min_pallas_bytes: int = 256 * 1024) -> jax.Array:
    """x: (N, C, H, W), weight: (C,) -> weight[None, :, None, None] * x."""
    N, C, H, W = x.shape
    assert weight.shape == (C,), f"weight must be ({C},), got {weight.shape}"

    # Promoted compute/output dtype (matches torch promotion, e.g. bf16*f32->f32).
    out_dtype = jnp.result_type(x.dtype, weight.dtype)

    rows, cols = N * C, H * W

    # Tiny-problem fast path: a fused XLA elementwise op beats kernel launch +
    # pipeline setup when the whole tensor is a few hundred KiB or less.
    if x.size * x.dtype.itemsize < min_pallas_bytes:
        return (weight[None, :, None, None].astype(out_dtype)
                * x.astype(out_dtype)).astype(out_dtype)

    # Lane-dense 2-D views (contiguous reshape of NCHW -> free).
    x2 = x.reshape(rows, cols)
    w2 = (jnp.broadcast_to(weight[None, :], (N, C))
          .reshape(rows, 1).astype(out_dtype))

    # dtype-aware sublane packing for the row axis: 8 rows/vreg for 32-bit,
    # 16 for 16-bit, 32 for 8-bit dtypes.
    itemsize = jnp.dtype(x.dtype).itemsize
    row_base = {4: 8, 2: 16, 1: 32}.get(itemsize, 8)
    lane_base = 128

    # Caps: up to 512 x 4096 f32 (~8 MiB) blocks.  Double-buffered in+out is
    # ~32 MiB, under the explicit 48 MiB VMEM limit (v7x physical is 64 MiB).
    row_cap, col_cap = 512, 4096
    tr = _pick_tile(rows, row_base, row_cap)
    tc = _pick_tile(cols, lane_base, col_cap)

    grid_r = pl.cdiv(rows, tr)
    grid_c = pl.cdiv(cols, tc)

    # Megacore (v7x has 2 TensorCores): if the whole problem landed in a single
    # block but has enough rows, split the row axis so both cores get work.
    if grid_r == 1 and grid_c == 1 and rows >= 2 * row_base:
        half = (rows + 1) // 2
        tr = ((half + row_base - 1) // row_base) * row_base
        grid_r = pl.cdiv(rows, tr)

    grid = (grid_r, grid_c)

    out2 = pl.pallas_call(
        _scale_kernel,
        out_shape=jax.ShapeDtypeStruct((rows, cols), out_dtype),
        grid=grid,
        in_specs=[
            # per-row scale: one (tr, 1) column slab per row-tile
            pl.BlockSpec((tr, 1), lambda i, j: (i, 0)),
            # lane-dense data tile
            pl.BlockSpec((tr, tc), lambda i, j: (i, j)),
        ],
        out_specs=pl.BlockSpec((tr, tc), lambda i, j: (i, j)),
        compiler_params=pltpu.CompilerParams(
            dimension_semantics=("parallel", "parallel"),
            # Raise scoped-VMEM above the conservative defaults (16 MiB on
            # v5e, 32 MiB on v6e/v7x) so the 8 MiB blocks double-buffer
            # cleanly; 48 MiB stays under v7x's 64 MiB physical VMEM.
            vmem_limit_bytes=48 * 1024 * 1024,
        ),
    )(w2, x2)

    return out2.reshape(N, C, H, W)


if __name__ == "__main__":
    # Small shapes consistent with the module: C=3 matches the weight size.
    key = jax.random.PRNGKey(0)
    x = jax.random.normal(key, (2, 3, 16, 16), dtype=jnp.float32)

    # Deterministic parameter init, matching torch.ones(3).
    weight = jnp.ones((3,), dtype=jnp.float32)

    # Force the Pallas path even at this tiny size so the kernel is exercised.
    out = jax.block_until_ready(channel_scale(x, weight, min_pallas_bytes=0))
    ref = weight[None, :, None, None] * x
    assert out.shape == ref.shape
    assert out.dtype == ref.dtype
    assert jnp.allclose(out, ref, atol=1e-6), "mismatch vs reference (ones weight)"

    # Non-trivial per-channel weight so the broadcast path is really exercised.
    weight2 = jnp.array([0.5, -2.0, 3.25], dtype=jnp.float32)
    out2 = jax.block_until_ready(channel_scale(x, weight2, min_pallas_bytes=0))
    ref2 = weight2[None, :, None, None] * x
    assert jnp.allclose(out2, ref2, atol=1e-6), "mismatch vs reference (varied weight)"

    # Default call exercises the tiny-shape fast path (plain XLA elementwise).
    out3 = jax.block_until_ready(channel_scale(x, weight2))
    assert jnp.allclose(out3, ref2, atol=1e-6), "mismatch vs reference (fast path)"

    print("KERNEL_OK")
</pallas_src>

<mosaic_0001>
module attributes {stable_mosaic.version = 11 : i64} {
  func.func @_scale_kernel(%arg0: i32, %arg1: i32, %arg2: memref<6x1xf32, #tpu.memory_space<vmem>>, %arg3: memref<6x256xf32, #tpu.memory_space<vmem>>, %arg4: memref<6x256xf32, #tpu.memory_space<vmem>>) attributes {dimension_semantics = [#tpu.dimension_semantics<parallel>, #tpu.dimension_semantics<parallel>], iteration_bounds = array<i64: 1, 1>, scalar_prefetch = 0 : i64, scratch_operands = 0 : i64, tpu.core_type = #tpu.core_type<tc>, window_params = [{transform_indices = @transform_0, window_bounds = array<i64: 6, 1>}, {transform_indices = @transform_1, window_bounds = array<i64: 6, 256>}, {transform_indices = @transform_2, window_bounds = array<i64: 6, 256>}]} {
    %c0 = arith.constant 0 : index
    %c0_0 = arith.constant 0 : index
    %0 = vector.load %arg3[%c0, %c0_0] : memref<6x256xf32, #tpu.memory_space<vmem>>, vector<6x256xf32>
    %c0_1 = arith.constant 0 : index
    %c0_2 = arith.constant 0 : index
    %1 = vector.load %arg2[%c0_1, %c0_2] : memref<6x1xf32, #tpu.memory_space<vmem>>, vector<6x1xf32>
    %2 = vector.broadcast %1 : vector<6x1xf32> to vector<6x256xf32>
    %3 = arith.mulf %0, %2 : vector<6x256xf32>
    %c0_3 = arith.constant 0 : index
    %c0_4 = arith.constant 0 : index
    %4 = vector.load %arg4[%c0_3, %c0_4] : memref<6x256xf32, #tpu.memory_space<vmem>>, vector<6x256xf32>
    tpu.vector_store %arg4[%c0_3, %c0_4], %3 {strides = array<i32>} : memref<6x256xf32, #tpu.memory_space<vmem>>, vector<6x256xf32>,
    return
  }
  func.func @transform_0(%arg0: i32, %arg1: i32) -> (i32, i32) {
    %c0_i32 = arith.constant 0 : i32
    %c0_i32_0 = arith.constant 0 : i32
    return %arg0, %c0_i32 : i32, i32
  }
  func.func @transform_1(%arg0: i32, %arg1: i32) -> (i32, i32) {
    %c0_i32 = arith.constant 0 : i32
    return %arg0, %arg1 : i32, i32
  }
  func.func @transform_2(%arg0: i32, %arg1: i32) -> (i32, i32) {
    %c0_i32 = arith.constant 0 : i32
    return %arg0, %arg1 : i32, i32
  }
}

</mosaic_0001>

<llo_original>
// kernel: tpu_custom_call.1
$region0: #{tpu_custom_call.1}
  #allocation0 [shape = 'u32[]', space=smem, size = 0x4, offset = 0x4, fixed_abs, tag = 'smem constant byte address 0x4 - core index']
  #allocation1 [shape = 'u32[72,128]{1,0:T(1,128)}', space=vmem, size = 0x9000, scoped, tag = 'internal scratch']
  %s0 = inlined_call_operand.vmem [shape: f32[6,1], index: 0, kind: input, shape index: {}]
  %s1 = inlined_call_operand.hbm [shape: f32[6,256], index: 1, kind: input, shape index: {}]
  %s2 = inlined_call_operand.hbm [shape: f32[6,256], index: 2, kind: output, shape index: {}]
  %s3 = sld [smem:[#allocation0]]
  $region22: #{tpu_custom_call.1} parent=0
    _
  %s5 = ssub.s32 1, %s3
  %s6 = scalar_select 0, %s5, %s3
  $region1: #{tpu_custom_call.1} parent=0
    #allocation2 [shape = 'u8[8192]{0}', space=vmem, size = 0x2000, scoped, tag = 'input window, operand 1, single buffered']
    #allocation3 [shape = 's32[1]{0}', space=sflag, size = 0x4, scoped, tag = 'scoped memory for tpu_custom_call.1']
    #allocation4 [shape = 's32[1]{0}', space=sflag, size = 0x4, scoped, tag = 'scoped memory for tpu_custom_call.1']
    #allocation5 [shape = 'u8[8192]{0}', space=vmem, size = 0x2000, scoped, tag = 'output window, operand 0, single buffered']
    %7 = vsyncpa [#allocation3], 0
    %8 = vsyncpa [#allocation4], 0
    // Predicated region
    $region2: #{tpu_custom_call.1} parent=1 // pred_check
      _
    $region3: #{tpu_custom_call.1} parent=1 // pred_check_branch
      %10 = sbr.rel (0) target = $region5
    $region4: #{tpu_custom_call.1} parent=1 // pred_region
      _
    $region5: #{tpu_custom_call.1} parent=1 // pred_fallthru
      _
    // Predicated region
    $region6: #{tpu_custom_call.1} parent=1 // pred_check
      _
    $region7: #{tpu_custom_call.1} parent=1 // pred_check_branch
      %12 = sbr.rel (0) target = $region9
    $region8: #{tpu_custom_call.1} parent=1 // pred_region
      %14 = vsyncadd [#allocation3], 0
      %s16 = sshll.u32 %s1, 4
      %s17 = int_to_ptr.hbm [resolvable:$true] %s16
      %s18 = sshll.u32 [#allocation2], 4
      %s19 = int_to_ptr.vmem [resolvable:$true] %s18
      %21 = dma.hbm_to_vmem [thread:$0]  %s17, 256, %s19, [#allocation3]
    $region9: #{tpu_custom_call.1} parent=1 // pred_fallthru
      _
    // Predicated region
    $region10: #{tpu_custom_call.1} parent=1 // pred_check
      _
    $region11: #{tpu_custom_call.1} parent=1 // pred_check_branch
      %23 = sbr.rel (0) target = $region13
    $region12: #{tpu_custom_call.1} parent=1 // pred_region
      %25 = dma.done [#allocation3], 256
    $region13: #{tpu_custom_call.1} parent=1 // pred_fallthru
      _
    %v26 = vld [vmem:[#allocation2] sm:$0x3f]
    %v27 = vld [vmem:[#allocation2 + $0x8] sm:$0x3f]
    %v28 = vld [vmem:[%s0] sm:$0x3f]
    %30 = vset.pattern.permute.xlu0 0
    %31 = vperm.xlu0 %30, %v28
    %v32 = vpop.permute.xlu0 %31
    %v34 = vmul.f32 %v26, %v32
    %v35 = vmul.f32 %v27, %v32
    %36 = vst [vmem:[#allocation5] sm:$0x3f] %v34
    %37 = vst [vmem:[#allocation5 + $0x8] sm:$0x3f] %v35
    // Predicated region
    $region14: #{tpu_custom_call.1} parent=1 // pred_check
      _
    $region15: #{tpu_custom_call.1} parent=1 // pred_check_branch
      %39 = sbr.rel (0) target = $region17
    $region16: #{tpu_custom_call.1} parent=1 // pred_region
      %41 = vsyncadd [#allocation4], 0
      %s43 = sshll.u32 [#allocation5], 4
      %s44 = int_to_ptr.vmem [resolvable:$true] %s43
      %s45 = sshll.u32 %s2, 4
      %s46 = int_to_ptr.hbm [resolvable:$true] %s45
      %48 = dma.vmem_to_hbm [thread:$0]  %s44, 256, %s46, [#allocation4]
    $region17: #{tpu_custom_call.1} parent=1 // pred_fallthru
      _
    // Predicated region
    $region18: #{tpu_custom_call.1} parent=1 // pred_check
      _
    $region19: #{tpu_custom_call.1} parent=1 // pred_check_branch
      %50 = sbr.rel (0) target = $region21
    $region20: #{tpu_custom_call.1} parent=1 // pred_region
      %52 = dma.done [#allocation4], 256
    $region21: #{tpu_custom_call.1} parent=1 // pred_fallthru
      _
    %53 = vsyncpa [#allocation3], 1
    %54 = vsyncpa [#allocation4], 1

</llo_original>
